<compile_context>
chip_gen: v5e
topology: v5e:2x2
jax: 0.10.0
libtpu: 0.0.40
codegen_flags: <defaults>
</compile_context>

<pallas_src>
import functools

import jax
import jax.numpy as jnp
from jax.experimental import pallas as pl
from jax.experimental.pallas import tpu as pltpu

LANE = 128  # TPU vreg lane width


def _round_up(n, m):
    return (n + m - 1) // m * m


def _has_bf16_valu():
    """True on chips with a bf16 VPU path (v6e, v7x); False on v5e and older."""
    try:
        kind = jax.devices()[0].device_kind.lower()
        return not any(v in kind for v in ("v2", "v3", "v4", "v5"))
    except Exception:
        return True


def mlp_kernel(x_ref,
               w1_ref, b1_ref,
               w2_ref, b2_ref,
               w3_ref, b3_ref,
               w4_ref, b4_ref,
               w5_ref, b5_ref,
               o_ref, *, bf16_act):
    # 5 chained MXU matmuls: bf16 operands, f32 accumulation, f32 bias add.

    def hidden_layer(h, w_ref, b_ref):
        acc = jnp.dot(h, w_ref[...], preferred_element_type=jnp.float32) + b_ref[...]
        if bf16_act:
            # v6e/v7x: downcast BEFORE ReLU and do the ReLU in packed bf16.
            # Exact: bf16 rounding is monotone & sign-preserving, so
            # max(bf16(y), 0) == bf16(max(y, 0)).
            return jnp.maximum(acc.astype(jnp.bfloat16), 0)
        # v5e (no bf16 VALU): ReLU in f32, single downcast for the next matmul.
        return jnp.maximum(acc, 0.0).astype(jnp.bfloat16)

    h = x_ref[...]                                   # bf16 (TM, in_features)
    h = hidden_layer(h, w1_ref, b1_ref)
    h = hidden_layer(h, w2_ref, b2_ref)
    h = hidden_layer(h, w3_ref, b3_ref)
    h = hidden_layer(h, w4_ref, b4_ref)
    acc = jnp.dot(h, w5_ref[...], preferred_element_type=jnp.float32) + b5_ref[...]
    o_ref[...] = acc.astype(o_ref.dtype)             # lane-dense bf16 (TM, 128) store


def prepare_params(params):
    """One-time host-side prep: cast weights to bf16, biases to f32, and
    zero-pad every hidden/output width to a multiple of 128 (plus the matching
    input rows of the following layer).  The first layer's input rows stay
    unpadded so they match x."""
    ws, bs = [], []
    prev_out_pad = params[0][0].shape[0]
    for (w, b) in params:
        in_f, out_f = w.shape
        out_pad = _round_up(out_f, LANE)
        ws.append(jnp.pad(w.astype(jnp.bfloat16),
                          ((0, prev_out_pad - in_f), (0, out_pad - out_f))))
        bs.append(jnp.pad(b.astype(jnp.float32).reshape(1, -1),
                          ((0, 0), (0, out_pad - out_f))))
        prev_out_pad = out_pad
    return ws, bs


def _choose_tile(B, tm_max):
    """Batch tile: as big as tm_max, multiple of 8 rows, but small enough that
    the grid has >=4 steps whenever the batch allows it (>=2 steps per
    TensorCore on the 2-TC v7x, >=2 steps for pipelining on v5e/v6e)."""
    b8 = _round_up(B, 8)
    min_steps = 4
    tm = min(tm_max, max(8, _round_up(pl.cdiv(b8, min_steps), 8)))
    return min(tm, b8)


@functools.partial(jax.jit, static_argnames=("num_class", "tm"))
def mlp_forward(x, ws, bs, *, num_class, tm=4096):
    """x: (B, input_size) f32. ws/bs: outputs of prepare_params()."""
    B, in_features = x.shape
    n_pad = ws[-1].shape[1]                      # padded output width (multiple of 128)

    tm = _choose_tile(B, tm)
    b_pad = _round_up(B, tm)
    x_p = x.astype(jnp.bfloat16)
    if b_pad != B:
        x_p = jnp.pad(x_p, ((0, b_pad - B), (0, 0)))

    grid = (b_pad // tm,)

    flat_args = [x_p]
    for w, b in zip(ws, bs):
        flat_args += [w, b]

    def resident(arr):
        # Full array resident in VMEM for every grid step (weights / biases).
        return pl.BlockSpec(arr.shape, lambda i: (0, 0))

    in_specs = [pl.BlockSpec((tm, in_features), lambda i: (i, 0))]
    for w, b in zip(ws, bs):
        in_specs += [resident(w), resident(b)]

    out_specs = pl.BlockSpec((tm, n_pad), lambda i: (i, 0))

    flops = 2 * b_pad * sum(int(w.shape[0]) * int(w.shape[1]) for w in ws)
    bytes_accessed = (
        int(x_p.size) * x_p.dtype.itemsize
        + sum(int(a.size) * a.dtype.itemsize for a in flat_args[1:])
        + b_pad * n_pad * 2                       # bf16 output writeback
    )

    kernel = functools.partial(mlp_kernel, bf16_act=_has_bf16_valu())

    out = pl.pallas_call(
        kernel,
        out_shape=jax.ShapeDtypeStruct((b_pad, n_pad), jnp.bfloat16),
        grid=grid,
        in_specs=in_specs,
        out_specs=out_specs,
        compiler_params=pltpu.CompilerParams(
            dimension_semantics=("parallel",),     # megacore sharding on v7x
            vmem_limit_bytes=32 * 1024 * 1024,     # <=scoped default everywhere; usage < 8 MiB
        ),
        cost_estimate=pl.CostEstimate(
            flops=flops, transcendentals=0, bytes_accessed=bytes_accessed),
    )(*flat_args)

    # Slice away batch / feature padding, return f32 logits (exact upcast).
    return out[:B, :num_class].astype(jnp.float32)


def init_linear_params(key, in_features, out_features):
    """Deterministic init mimicking nn.Linear default (uniform +/- 1/sqrt(fan_in)).
    Weight stored as (in, out) == PyTorch weight.T, so the kernel computes x @ W."""
    kw, kb = jax.random.split(key)
    bound = 1.0 / jnp.sqrt(jnp.float32(in_features))
    w = jax.random.uniform(kw, (in_features, out_features), jnp.float32, -bound, bound)
    b = jax.random.uniform(kb, (1, out_features), jnp.float32, -bound, bound)
    return w, b


def mlp_reference(x, params):
    # Same intermediate numerics as the kernel: bf16 matmul operands, f32
    # accumulation, f32 bias-add / ReLU.  Final output left in f32 (kernel
    # stores bf16, so comparison uses a bf16-rounding tolerance).
    h = x
    n = len(params)
    for i, (w, b) in enumerate(params):
        h = jnp.dot(h.astype(jnp.bfloat16), w.astype(jnp.bfloat16),
                    preferred_element_type=jnp.float32) + b
        if i < n - 1:
            h = jnp.maximum(h, 0.0)
    return h


if __name__ == "__main__":
    # Small demo shapes consistent with the module; 4 grid steps at the
    # auto-chosen TM=64 so pipelining / megacore paths are exercised.
    batch = 256
    input_size = 32
    hidden_1, hidden_2, hidden_3, hidden_4 = 64, 48, 32, 24
    num_class = 10

    key = jax.random.PRNGKey(0)
    k_x, k1, k2, k3, k4, k5 = jax.random.split(key, 6)

    x = jax.random.normal(k_x, (batch, input_size), jnp.float32)

    dims = [input_size, hidden_1, hidden_2, hidden_3, hidden_4, num_class]
    keys = [k1, k2, k3, k4, k5]
    params = [init_linear_params(keys[i], dims[i], dims[i + 1]) for i in range(5)]

    ws, bs = prepare_params(params)                      # one-time cast + pad
    out = jax.block_until_ready(mlp_forward(x, ws, bs, num_class=num_class))
    ref = mlp_reference(x, params)

    assert out.shape == (batch, num_class)
    # Kernel stores the output in bf16; tolerance covers bf16 rounding only.
    assert jnp.allclose(out, ref, atol=2e-2, rtol=2e-2), \
        float(jnp.max(jnp.abs(out - ref)))

    print("KERNEL_OK")
</pallas_src>

<mosaic_0001>
module attributes {stable_mosaic.version = 11 : i64} {
  func.func @mlp_kernel(%arg0: i32, %arg1: memref<64x32xbf16, #tpu.memory_space<vmem>>, %arg2: memref<32x128xbf16, #tpu.memory_space<vmem>>, %arg3: memref<1x128xf32, #tpu.memory_space<vmem>>, %arg4: memref<128x128xbf16, #tpu.memory_space<vmem>>, %arg5: memref<1x128xf32, #tpu.memory_space<vmem>>, %arg6: memref<128x128xbf16, #tpu.memory_space<vmem>>, %arg7: memref<1x128xf32, #tpu.memory_space<vmem>>, %arg8: memref<128x128xbf16, #tpu.memory_space<vmem>>, %arg9: memref<1x128xf32, #tpu.memory_space<vmem>>, %arg10: memref<128x128xbf16, #tpu.memory_space<vmem>>, %arg11: memref<1x128xf32, #tpu.memory_space<vmem>>, %arg12: memref<64x128xbf16, #tpu.memory_space<vmem>>) attributes {dimension_semantics = [#tpu.dimension_semantics<parallel>], iteration_bounds = array<i64: 4>, scalar_prefetch = 0 : i64, scratch_operands = 0 : i64, tpu.core_type = #tpu.core_type<tc>, window_params = [{transform_indices = @transform_0, window_bounds = array<i64: 64, 32>}, {pipeline_mode = #tpu.pipeline_mode<synchronous>, transform_indices = @transform_1, window_bounds = array<i64: 32, 128>}, {pipeline_mode = #tpu.pipeline_mode<synchronous>, transform_indices = @transform_2, window_bounds = array<i64: 1, 128>}, {pipeline_mode = #tpu.pipeline_mode<synchronous>, transform_indices = @transform_3, window_bounds = array<i64: 128, 128>}, {pipeline_mode = #tpu.pipeline_mode<synchronous>, transform_indices = @transform_4, window_bounds = array<i64: 1, 128>}, {pipeline_mode = #tpu.pipeline_mode<synchronous>, transform_indices = @transform_5, window_bounds = array<i64: 128, 128>}, {pipeline_mode = #tpu.pipeline_mode<synchronous>, transform_indices = @transform_6, window_bounds = array<i64: 1, 128>}, {pipeline_mode = #tpu.pipeline_mode<synchronous>, transform_indices = @transform_7, window_bounds = array<i64: 128, 128>}, {pipeline_mode = #tpu.pipeline_mode<synchronous>, transform_indices = @transform_8, window_bounds = array<i64: 1, 128>}, {pipeline_mode = #tpu.pipeline_mode<synchronous>, transform_indices = @transform_9, window_bounds = array<i64: 128, 128>}, {pipeline_mode = #tpu.pipeline_mode<synchronous>, transform_indices = @transform_10, window_bounds = array<i64: 1, 128>}, {transform_indices = @transform_11, window_bounds = array<i64: 64, 128>}]} {
    %c0 = arith.constant 0 : index
    %c0_0 = arith.constant 0 : index
    %0 = vector.load %arg1[%c0, %c0_0] : memref<64x32xbf16, #tpu.memory_space<vmem>>, vector<64x32xbf16>
    %c0_1 = arith.constant 0 : index
    %c0_2 = arith.constant 0 : index
    %1 = vector.load %arg2[%c0_1, %c0_2] : memref<32x128xbf16, #tpu.memory_space<vmem>>, vector<32x128xbf16>
    %cst = arith.constant dense<0.000000e+00> : vector<64x128xf32>
    %2 = tpu.matmul %0, %1, %cst {dimension_numbers = #tpu.dot_dimension_numbers<[1], [0], [0], [1], [0, 0, 1, 1], [], []>} : vector<64x32xbf16>, vector<32x128xbf16>, vector<64x128xf32> -> vector<64x128xf32>
    %c0_3 = arith.constant 0 : index
    %c0_4 = arith.constant 0 : index
    %3 = vector.load %arg3[%c0_3, %c0_4] : memref<1x128xf32, #tpu.memory_space<vmem>>, vector<1x128xf32>
    %4 = vector.broadcast %3 : vector<1x128xf32> to vector<64x128xf32>
    %5 = arith.addf %2, %4 : vector<64x128xf32>
    %6 = arith.truncf %5 : vector<64x128xf32> to vector<64x128xbf16>
    %cst_5 = arith.constant 0.000000e+00 : bf16
    %7 = vector.broadcast %cst_5 : bf16 to vector<64x128xbf16>
    %8 = arith.maximumf %6, %7 : vector<64x128xbf16>
    %c0_6 = arith.constant 0 : index
    %c0_7 = arith.constant 0 : index
    %9 = vector.load %arg4[%c0_6, %c0_7] : memref<128x128xbf16, #tpu.memory_space<vmem>>, vector<128x128xbf16>
    %cst_8 = arith.constant dense<0.000000e+00> : vector<64x128xf32>
    %10 = tpu.matmul %8, %9, %cst_8 {dimension_numbers = #tpu.dot_dimension_numbers<[1], [0], [0], [1], [0, 0, 1, 1], [], []>} : vector<64x128xbf16>, vector<128x128xbf16>, vector<64x128xf32> -> vector<64x128xf32>
    %c0_9 = arith.constant 0 : index
    %c0_10 = arith.constant 0 : index
    %11 = vector.load %arg5[%c0_9, %c0_10] : memref<1x128xf32, #tpu.memory_space<vmem>>, vector<1x128xf32>
    %12 = vector.broadcast %11 : vector<1x128xf32> to vector<64x128xf32>
    %13 = arith.addf %10, %12 : vector<64x128xf32>
    %14 = arith.truncf %13 : vector<64x128xf32> to vector<64x128xbf16>
    %cst_11 = arith.constant 0.000000e+00 : bf16
    %15 = vector.broadcast %cst_11 : bf16 to vector<64x128xbf16>
    %16 = arith.maximumf %14, %15 : vector<64x128xbf16>
    %c0_12 = arith.constant 0 : index
    %c0_13 = arith.constant 0 : index
    %17 = vector.load %arg6[%c0_12, %c0_13] : memref<128x128xbf16, #tpu.memory_space<vmem>>, vector<128x128xbf16>
    %cst_14 = arith.constant dense<0.000000e+00> : vector<64x128xf32>
    %18 = tpu.matmul %16, %17, %cst_14 {dimension_numbers = #tpu.dot_dimension_numbers<[1], [0], [0], [1], [0, 0, 1, 1], [], []>} : vector<64x128xbf16>, vector<128x128xbf16>, vector<64x128xf32> -> vector<64x128xf32>
    %c0_15 = arith.constant 0 : index
    %c0_16 = arith.constant 0 : index
    %19 = vector.load %arg7[%c0_15, %c0_16] : memref<1x128xf32, #tpu.memory_space<vmem>>, vector<1x128xf32>
    %20 = vector.broadcast %19 : vector<1x128xf32> to vector<64x128xf32>
    %21 = arith.addf %18, %20 : vector<64x128xf32>
    %22 = arith.truncf %21 : vector<64x128xf32> to vector<64x128xbf16>
    %cst_17 = arith.constant 0.000000e+00 : bf16
    %23 = vector.broadcast %cst_17 : bf16 to vector<64x128xbf16>
    %24 = arith.maximumf %22, %23 : vector<64x128xbf16>
    %c0_18 = arith.constant 0 : index
    %c0_19 = arith.constant 0 : index
    %25 = vector.load %arg8[%c0_18, %c0_19] : memref<128x128xbf16, #tpu.memory_space<vmem>>, vector<128x128xbf16>
    %cst_20 = arith.constant dense<0.000000e+00> : vector<64x128xf32>
    %26 = tpu.matmul %24, %25, %cst_20 {dimension_numbers = #tpu.dot_dimension_numbers<[1], [0], [0], [1], [0, 0, 1, 1], [], []>} : vector<64x128xbf16>, vector<128x128xbf16>, vector<64x128xf32> -> vector<64x128xf32>
    %c0_21 = arith.constant 0 : index
    %c0_22 = arith.constant 0 : index
    %27 = vector.load %arg9[%c0_21, %c0_22] : memref<1x128xf32, #tpu.memory_space<vmem>>, vector<1x128xf32>
    %28 = vector.broadcast %27 : vector<1x128xf32> to vector<64x128xf32>
    %29 = arith.addf %26, %28 : vector<64x128xf32>
    %30 = arith.truncf %29 : vector<64x128xf32> to vector<64x128xbf16>
    %cst_23 = arith.constant 0.000000e+00 : bf16
    %31 = vector.broadcast %cst_23 : bf16 to vector<64x128xbf16>
    %32 = arith.maximumf %30, %31 : vector<64x128xbf16>
    %c0_24 = arith.constant 0 : index
    %c0_25 = arith.constant 0 : index
    %33 = vector.load %arg10[%c0_24, %c0_25] : memref<128x128xbf16, #tpu.memory_space<vmem>>, vector<128x128xbf16>
    %cst_26 = arith.constant dense<0.000000e+00> : vector<64x128xf32>
    %34 = tpu.matmul %32, %33, %cst_26 {dimension_numbers = #tpu.dot_dimension_numbers<[1], [0], [0], [1], [0, 0, 1, 1], [], []>} : vector<64x128xbf16>, vector<128x128xbf16>, vector<64x128xf32> -> vector<64x128xf32>
    %c0_27 = arith.constant 0 : index
    %c0_28 = arith.constant 0 : index
    %35 = vector.load %arg11[%c0_27, %c0_28] : memref<1x128xf32, #tpu.memory_space<vmem>>, vector<1x128xf32>
    %36 = vector.broadcast %35 : vector<1x128xf32> to vector<64x128xf32>
    %37 = arith.addf %34, %36 : vector<64x128xf32>
    %38 = arith.truncf %37 : vector<64x128xf32> to vector<64x128xbf16>
    %c0_29 = arith.constant 0 : index
    %c0_30 = arith.constant 0 : index
    %39 = vector.load %arg12[%c0_29, %c0_30] : memref<64x128xbf16, #tpu.memory_space<vmem>>, vector<64x128xbf16>
    tpu.vector_store %arg12[%c0_29, %c0_30], %38 {strides = array<i32>} : memref<64x128xbf16, #tpu.memory_space<vmem>>, vector<64x128xbf16>,
    return
  }
  func.func @transform_0(%arg0: i32) -> (i32, i32) {
    %c0_i32 = arith.constant 0 : i32
    %c0_i32_0 = arith.constant 0 : i32
    return %arg0, %c0_i32 : i32, i32
  }
  func.func @transform_1(%arg0: i32) -> (i32, i32) {
    %c0_i32 = arith.constant 0 : i32
    %c0_i32_0 = arith.constant 0 : i32
    %c0_i32_1 = arith.constant 0 : i32
    return %c0_i32, %c0_i32_0 : i32, i32
  }
  func.func @transform_2(%arg0: i32) -> (i32, i32) {
    %c0_i32 = arith.constant 0 : i32
    %c0_i32_0 = arith.constant 0 : i32
    %c0_i32_1 = arith.constant 0 : i32
    return %c0_i32, %c0_i32_0 : i32, i32
  }
  func.func @transform_3(%arg0: i32) -> (i32, i32) {
    %c0_i32 = arith.constant 0 : i32
    %c0_i32_0 = arith.constant 0 : i32
    %c0_i32_1 = arith.constant 0 : i32
    return %c0_i32, %c0_i32_0 : i32, i32
  }
  func.func @transform_4(%arg0: i32) -> (i32, i32) {
    %c0_i32 = arith.constant 0 : i32
    %c0_i32_0 = arith.constant 0 : i32
    %c0_i32_1 = arith.constant 0 : i32
    return %c0_i32, %c0_i32_0 : i32, i32
  }
  func.func @transform_5(%arg0: i32) -> (i32, i32) {
    %c0_i32 = arith.constant 0 : i32
    %c0_i32_0 = arith.constant 0 : i32
    %c0_i32_1 = arith.constant 0 : i32
    return %c0_i32, %c0_i32_0 : i32, i32
  }
  func.func @transform_6(%arg0: i32) -> (i32, i32) {
    %c0_i32 = arith.constant 0 : i32
    %c0_i32_0 = arith.constant 0 : i32
    %c0_i32_1 = arith.constant 0 : i32
    return %c0_i32, %c0_i32_0 : i32, i32
  }
  func.func @transform_7(%arg0: i32) -> (i32, i32) {
    %c0_i32 = arith.constant 0 : i32
    %c0_i32_0 = arith.constant 0 : i32
    %c0_i32_1 = arith.constant 0 : i32
    return %c0_i32, %c0_i32_0 : i32, i32
  }
  func.func @transform_8(%arg0: i32) -> (i32, i32) {
    %c0_i32 = arith.constant 0 : i32
    %c0_i32_0 = arith.constant 0 : i32
    %c0_i32_1 = arith.constant 0 : i32
    return %c0_i32, %c0_i32_0 : i32, i32
  }
  func.func @transform_9(%arg0: i32) -> (i32, i32) {
    %c0_i32 = arith.constant 0 : i32
    %c0_i32_0 = arith.constant 0 : i32
    %c0_i32_1 = arith.constant 0 : i32
    return %c0_i32, %c0_i32_0 : i32, i32
  }
  func.func @transform_10(%arg0: i32) -> (i32, i32) {
    %c0_i32 = arith.constant 0 : i32
    %c0_i32_0 = arith.constant 0 : i32
    %c0_i32_1 = arith.constant 0 : i32
    return %c0_i32, %c0_i32_0 : i32, i32
  }
  func.func @transform_11(%arg0: i32) -> (i32, i32) {
    %c0_i32 = arith.constant 0 : i32
    %c0_i32_0 = arith.constant 0 : i32
    return %arg0, %c0_i32 : i32, i32
  }
}

</mosaic_0001>

<llo_original>
// kernel: mlp_forward.1
$region0: #{mlp_forward.1}
  #allocation0 [shape = 'u32[]', space=smem, size = 0x4, offset = 0x4, fixed_abs, tag = 'smem constant byte address 0x4 - core index']
  #allocation1 [shape = 'u32[72,128]{1,0:T(1,128)}', space=vmem, size = 0x9000, scoped, tag = 'internal scratch']
  %s0 = inlined_call_operand.vmem [shape: bf16[256,32], index: 0, kind: input, shape index: {}]
  %s1 = inlined_call_operand.hbm [shape: bf16[32,128], index: 1, kind: input, shape index: {}]
  %s2 = inlined_call_operand.vmem [shape: f32[1,128], index: 2, kind: input, shape index: {}]
  %s3 = inlined_call_operand.vmem [shape: bf16[128,128], index: 3, kind: input, shape index: {}]
  %s4 = inlined_call_operand.vmem [shape: f32[1,128], index: 4, kind: input, shape index: {}]
  %s5 = inlined_call_operand.vmem [shape: bf16[128,128], index: 5, kind: input, shape index: {}]
  %s6 = inlined_call_operand.vmem [shape: f32[1,128], index: 6, kind: input, shape index: {}]
  %s7 = inlined_call_operand.vmem [shape: bf16[128,128], index: 7, kind: input, shape index: {}]
  %s8 = inlined_call_operand.vmem [shape: f32[1,128], index: 8, kind: input, shape index: {}]
  %s9 = inlined_call_operand.vmem [shape: bf16[128,128], index: 9, kind: input, shape index: {}]
  %s10 = inlined_call_operand.vmem [shape: f32[1,128], index: 10, kind: input, shape index: {}]
  %s11 = inlined_call_operand.vmem [shape: bf16[256,128], index: 11, kind: output, shape index: {}]
  %s12 = sld [smem:[#allocation0]]
  $region81: #{mlp_forward.1} parent=0
    _
  %s14 = ssub.s32 1, %s12
  %s15 = scalar_select 0, %s14, %s12
  $region1: #{mlp_forward.1} parent=0
    #allocation2 [shape = 'u8[8192]{0}', space=vmem, size = 0x2000, scoped, tag = 'input window, operand 1, single buffered']
    #allocation3 [shape = 's32[2]{0}', space=sflag, size = 0x8, scoped, tag = 'scoped memory for mlp_forward.1']
    %16 = vsyncpa [#allocation3], 0
    loop: start=0, step=1, limit=6
    $region2: #{mlp_forward.1} parent=1 // loop_pre_header
      _
    $region3: #{mlp_forward.1} parent=1 // loop_header
      %s18 = sphi 0, %s22
      %p19 = scmp.ge.s32.totalorder %s18, 6
      %s28 = sphi 0, %s30
      %s31 = sphi 0, %s28
      %s32 = sphi 0, %s31
      %s48 = sphi 0, %s32
      %s52 = sphi 0, %s52
      %s54 = sphi 0, %s52
      %s55 = sphi 0, %s54
      %s69 = sphi 0, %s55
      %s73 = sphi 0, %s73
      %s75 = sphi 0, %s73
      %s76 = sphi 0, %s75
      %s90 = sphi 0, %s76
      %s94 = sphi 0, %s94
      %s96 = sphi 0, %s94
      %s97 = sphi 0, %s96
      %s111 = sphi 0, %s97
      %s115 = sphi 0, %s115
      %s117 = sphi 0, %s115
      %s118 = sphi 0, %s117
      %s132 = sphi 0, %s118
      %s136 = sphi 0, %s136
      %s138 = sphi 0, %s136
      %s139 = sphi 0, %s138
      %s153 = sphi 0, %s139
      %s157 = sphi 0, %s157
      %s159 = sphi 0, %s157
      %s160 = sphi 0, %s159
      %s174 = sphi 0, %s160
      %s178 = sphi 0, %s178
      %s180 = sphi 0, %s178
      %s181 = sphi 0, %s180
      %s195 = sphi 0, %s181
      %s199 = sphi 0, %s199
      %s201 = sphi 0, %s199
      %s202 = sphi 0, %s201
      %s216 = sphi 0, %s202
      %s220 = sphi 0, %s220
      %s222 = sphi 0, %s220
      %s223 = sphi 0, %s222
      %s237 = sphi 0, %s223
      %s241 = sphi 0, %s241
      %s243 = sphi 0, %s241
      %s244 = sphi 0, %s243
      %s258 = sphi 0, %s244
      %s264 = sphi 0, %s266
      %s267 = sphi 0, %s264
      %s268 = sphi 0, %s267
      %s284 = sphi 0, %s268
    $region4: #{mlp_forward.1} parent=1 // loop_header_branch
      %21 = sbr.rel (%p19) target = $region8
    $region5: #{mlp_forward.1} parent=1 // loop_body
      %s23 = ssub.s32 %s18, 1
      %s24 = ssub.s32 %s18, 2
      %s25 = sadd.s32 %s18, 1
      %s26 = ssub.s32 %s18, %s25
      %p27 = scmp.eq.s32.totalorder %s26, 0
      %s29 = sadd.s32 %s28, 1
      %s30 = scalar_select %p27, %s28, %s29
      %p33 = pneg %p27
      %p34 = scmp.eq.s32.totalorder %s18, 3
      %p35 = por %p33, %p34
      %p36 = scmp.ne.s32.totalorder %s28, %s31
      %p37 = scmp.eq.s32.totalorder %s18, 0
      %p38 = por %p36, %p37
      %p39 = scmp.ne.s32.totalorder %s28, %s31
      %p40 = scmp.eq.s32.totalorder %s23, 3
      %p41 = por %p39, %p40
      %p42 = scmp.ne.s32.totalorder %s31, %s32
      %p43 = scmp.eq.s32.totalorder %s23, 0
      %p44 = por %p42, %p43
      %p45 = scmp.ne.s32.totalorder %s31, %s32
      %p46 = scmp.eq.s32.totalorder %s24, 3
      %p47 = por %p45, %p46
      %p49 = scmp.ne.s32.totalorder %s32, %s48
      %p50 = scmp.eq.s32.totalorder %s24, 0
      %p51 = por %p49, %p50
      %s53 = sadd.s32 %s52, 1
      %p56 = scmp.eq.s32.totalorder %s18, 3
      %p57 = scmp.ne.s32.totalorder %s52, %s54
      %p58 = scmp.eq.s32.totalorder %s18, 0
      %p59 = por %p57, %p58
      %p60 = scmp.ne.s32.totalorder %s52, %s54
      %p61 = scmp.eq.s32.totalorder %s23, 3
      %p62 = por %p60, %p61
      %p63 = scmp.ne.s32.totalorder %s54, %s55
      %p64 = scmp.eq.s32.totalorder %s23, 0
      %p65 = por %p63, %p64
      %p66 = scmp.ne.s32.totalorder %s54, %s55
      %p67 = scmp.eq.s32.totalorder %s24, 3
      %p68 = por %p66, %p67
      %p70 = scmp.ne.s32.totalorder %s55, %s69
      %p71 = scmp.eq.s32.totalorder %s24, 0
      %p72 = por %p70, %p71
      %s74 = sadd.s32 %s73, 1
      %p77 = scmp.eq.s32.totalorder %s18, 3
      %p78 = scmp.ne.s32.totalorder %s73, %s75
      %p79 = scmp.eq.s32.totalorder %s18, 0
      %p80 = por %p78, %p79
      %p81 = scmp.ne.s32.totalorder %s73, %s75
      %p82 = scmp.eq.s32.totalorder %s23, 3
      %p83 = por %p81, %p82
      %p84 = scmp.ne.s32.totalorder %s75, %s76
      %p85 = scmp.eq.s32.totalorder %s23, 0
      %p86 = por %p84, %p85
      %p87 = scmp.ne.s32.totalorder %s75, %s76
      %p88 = scmp.eq.s32.totalorder %s24, 3
      %p89 = por %p87, %p88
      %p91 = scmp.ne.s32.totalorder %s76, %s90
      %p92 = scmp.eq.s32.totalorder %s24, 0
      %p93 = por %p91, %p92
      %s95 = sadd.s32 %s94, 1
      %p98 = scmp.eq.s32.totalorder %s18, 3
      %p99 = scmp.ne.s32.totalorder %s94, %s96
      %p100 = scmp.eq.s32.totalorder %s18, 0
      %p101 = por %p99, %p100
      %p102 = scmp.ne.s32.totalorder %s94, %s96
      %p103 = scmp.eq.s32.totalorder %s23, 3
      %p104 = por %p102, %p103
      %p105 = scmp.ne.s32.totalorder %s96, %s97
      %p106 = scmp.eq.s32.totalorder %s23, 0
      %p107 = por %p105, %p106
      %p108 = scmp.ne.s32.totalorder %s96, %s97
      %p109 = scmp.eq.s32.totalorder %s24, 3
      %p110 = por %p108, %p109
      %p112 = scmp.ne.s32.totalorder %s97, %s111
      %p113 = scmp.eq.s32.totalorder %s24, 0
      %p114 = por %p112, %p113
      %s116 = sadd.s32 %s115, 1
      %p119 = scmp.eq.s32.totalorder %s18, 3
      %p120 = scmp.ne.s32.totalorder %s115, %s117
      %p121 = scmp.eq.s32.totalorder %s18, 0
      %p122 = por %p120, %p121
      %p123 = scmp.ne.s32.totalorder %s115, %s117
      %p124 = scmp.eq.s32.totalorder %s23, 3
      %p125 = por %p123, %p124
      %p126 = scmp.ne.s32.totalorder %s117, %s118
      %p127 = scmp.eq.s32.totalorder %s23, 0
      %p128 = por %p126, %p127
      %p129 = scmp.ne.s32.totalorder %s117, %s118
      %p130 = scmp.eq.s32.totalorder %s24, 3
      %p131 = por %p129, %p130
      %p133 = scmp.ne.s32.totalorder %s118, %s132
      %p134 = scmp.eq.s32.totalorder %s24, 0
      %p135 = por %p133, %p134
      %s137 = sadd.s32 %s136, 1
      %p140 = scmp.eq.s32.totalorder %s18, 3
      %p141 = scmp.ne.s32.totalorder %s136, %s138
      %p142 = scmp.eq.s32.totalorder %s18, 0
      %p143 = por %p141, %p142
      %p144 = scmp.ne.s32.totalorder %s136, %s138
      %p145 = scmp.eq.s32.totalorder %s23, 3
      %p146 = por %p144, %p145
      %p147 = scmp.ne.s32.totalorder %s138, %s139
      %p148 = scmp.eq.s32.totalorder %s23, 0
      %p149 = por %p147, %p148
      %p150 = scmp.ne.s32.totalorder %s138, %s139
      %p151 = scmp.eq.s32.totalorder %s24, 3
      %p152 = por %p150, %p151
      %p154 = scmp.ne.s32.totalorder %s139, %s153
      %p155 = scmp.eq.s32.totalorder %s24, 0
      %p156 = por %p154, %p155
      %s158 = sadd.s32 %s157, 1
      %p161 = scmp.eq.s32.totalorder %s18, 3
      %p162 = scmp.ne.s32.totalorder %s157, %s159
      %p163 = scmp.eq.s32.totalorder %s18, 0
      %p164 = por %p162, %p163
      %p165 = scmp.ne.s32.totalorder %s157, %s159
      %p166 = scmp.eq.s32.totalorder %s23, 3
      %p167 = por %p165, %p166
      %p168 = scmp.ne.s32.totalorder %s159, %s160
      %p169 = scmp.eq.s32.totalorder %s23, 0
      %p170 = por %p168, %p169
      %p171 = scmp.ne.s32.totalorder %s159, %s160
      %p172 = scmp.eq.s32.totalorder %s24, 3
      %p173 = por %p171, %p172
      %p175 = scmp.ne.s32.totalorder %s160, %s174
      %p176 = scmp.eq.s32.totalorder %s24, 0
      %p177 = por %p175, %p176
      %s179 = sadd.s32 %s178, 1
      %p182 = scmp.eq.s32.totalorder %s18, 3
      %p183 = scmp.ne.s32.totalorder %s178, %s180
      %p184 = scmp.eq.s32.totalorder %s18, 0
      %p185 = por %p183, %p184
      %p186 = scmp.ne.s32.totalorder %s178, %s180
      %p187 = scmp.eq.s32.totalorder %s23, 3
      %p188 = por %p186, %p187
      %p189 = scmp.ne.s32.totalorder %s180, %s181
      %p190 = scmp.eq.s32.totalorder %s23, 0
      %p191 = por %p189, %p190
      %p192 = scmp.ne.s32.totalorder %s180, %s181
      %p193 = scmp.eq.s32.totalorder %s24, 3
      %p194 = por %p192, %p193
      %p196 = scmp.ne.s32.totalorder %s181, %s195
      %p197 = scmp.eq.s32.totalorder %s24, 0
      %p198 = por %p196, %p197
      %s200 = sadd.s32 %s199, 1
      %p203 = scmp.eq.s32.totalorder %s18, 3
      %p204 = scmp.ne.s32.totalorder %s199, %s201
      %p205 = scmp.eq.s32.totalorder %s18, 0
      %p206 = por %p204, %p205
      %p207 = scmp.ne.s32.totalorder %s199, %s201
      %p208 = scmp.eq.s32.totalorder %s23, 3
      %p209 = por %p207, %p208
      %p210 = scmp.ne.s32.totalorder %s201, %s202
      %p211 = scmp.eq.s32.totalorder %s23, 0
      %p212 = por %p210, %p211
      %p213 = scmp.ne.s32.totalorder %s201, %s202
      %p214 = scmp.eq.s32.totalorder %s24, 3
      %p215 = por %p213, %p214
      %p217 = scmp.ne.s32.totalorder %s202, %s216
      %p218 = scmp.eq.s32.totalorder %s24, 0
      %p219 = por %p217, %p218
      %s221 = sadd.s32 %s220, 1
      %p224 = scmp.eq.s32.totalorder %s18, 3
      %p225 = scmp.ne.s32.totalorder %s220, %s222
      %p226 = scmp.eq.s32.totalorder %s18, 0
      %p227 = por %p225, %p226
      %p228 = scmp.ne.s32.totalorder %s220, %s222
      %p229 = scmp.eq.s32.totalorder %s23, 3
      %p230 = por %p228, %p229
      %p231 = scmp.ne.s32.totalorder %s222, %s223
      %p232 = scmp.eq.s32.totalorder %s23, 0
      %p233 = por %p231, %p232
      %p234 = scmp.ne.s32.totalorder %s222, %s223
      %p235 = scmp.eq.s32.totalorder %s24, 3
      %p236 = por %p234, %p235
      %p238 = scmp.ne.s32.totalorder %s223, %s237
      %p239 = scmp.eq.s32.totalorder %s24, 0
      %p240 = por %p238, %p239
      %s242 = sadd.s32 %s241, 1
      %p245 = scmp.eq.s32.totalorder %s18, 3
      %p246 = scmp.ne.s32.totalorder %s241, %s243
      %p247 = scmp.eq.s32.totalorder %s18, 0
      %p248 = por %p246, %p247
      %p249 = scmp.ne.s32.totalorder %s241, %s243
      %p250 = scmp.eq.s32.totalorder %s23, 3
      %p251 = por %p249, %p250
      %p252 = scmp.ne.s32.totalorder %s243, %s244
      %p253 = scmp.eq.s32.totalorder %s23, 0
      %p254 = por %p252, %p253
      %p255 = scmp.ne.s32.totalorder %s243, %s244
      %p256 = scmp.eq.s32.totalorder %s24, 3
      %p257 = por %p255, %p256
      %p259 = scmp.ne.s32.totalorder %s244, %s258
      %p260 = scmp.eq.s32.totalorder %s24, 0
      %p261 = por %p259, %p260
      %s262 = ssub.s32 %s18, %s25
      %p263 = scmp.eq.s32.totalorder %s262, 0
      %s265 = sadd.s32 %s264, 1
      %s266 = scalar_select %p263, %s264, %s265
      %p269 = pneg %p263
      %p270 = scmp.eq.s32.totalorder %s18, 3
      %p271 = por %p269, %p270
      %p272 = scmp.ne.s32.totalorder %s264, %s267
      %p273 = scmp.eq.s32.totalorder %s18, 0
      %p274 = por %p272, %p273
      %p275 = scmp.ne.s32.totalorder %s264, %s267
      %p276 = scmp.eq.s32.totalorder %s23, 3
      %p277 = por %p275, %p276
      %p278 = scmp.ne.s32.totalorder %s267, %s268
      %p279 = scmp.eq.s32.totalorder %s23, 0
      %p280 = por %p278, %p279
      %p281 = scmp.ne.s32.totalorder %s267, %s268
      %p282 = scmp.eq.s32.totalorder %s24, 3
      %p283 = por %p281, %p282
      %p285 = scmp.ne.s32.totalorder %s268, %s284
      %p286 = scmp.eq.s32.totalorder %s24, 0
      %p287 = por %p285, %p286
      %p288 = scmp.le.s32.totalorder 1, %s18
      %p289 = scmp.lt.s32.totalorder %s18, 5
      %p290 = pnand %p288, %p289
      %p291 = pneg %p290
      // Predicated region
      $region9: #{mlp_forward.1} parent=5 // pred_check
        _
      $region10: #{mlp_forward.1} parent=5 // pred_check_branch
        %293 = sbr.rel (%p290) target = $region12
      $region11: #{mlp_forward.1} parent=5 // pred_region
        %s294 = ssub.s32 %s18, 1
        // Predicated region
        $region13: #{mlp_forward.1} parent=11 // pred_check
          %p295 = pneg %p65
        $region14: #{mlp_forward.1} parent=11 // pred_check_branch
          %297 = sbr.rel (%p295) target = $region16
        $region15: #{mlp_forward.1} parent=11 // pred_region
          %299 = vsyncadd [#allocation3], 0
          %s300 = sshll.u32 %s1, 4
          %s301 = int_to_ptr.hbm [resolvable:$true] %s300
          %s302 = sshll.u32 [#allocation2], 4
          %s303 = int_to_ptr.vmem [resolvable:$true] %s302
          %308 = dma.hbm_to_vmem [thread:$0]  %s301, 256, %s303, [#allocation3], 64, 64, 4
        $region16: #{mlp_forward.1} parent=11 // pred_fallthru
          _
        // Predicated region
        $region17: #{mlp_forward.1} parent=11 // pred_check
          %p309 = pneg %p86
        $region18: #{mlp_forward.1} parent=11 // pred_check_branch
          %311 = sbr.rel (%p309) target = $region20
        $region19: #{mlp_forward.1} parent=11 // pred_region
          _
        $region20: #{mlp_forward.1} parent=11 // pred_fallthru
          _
        // Predicated region
        $region21: #{mlp_forward.1} parent=11 // pred_check
          %p312 = pneg %p107
        $region22: #{mlp_forward.1} parent=11 // pred_check_branch
          %314 = sbr.rel (%p312) target = $region24
        $region23: #{mlp_forward.1} parent=11 // pred_region
          _
        $region24: #{mlp_forward.1} parent=11 // pred_fallthru
          _
        // Predicated region
        $region25: #{mlp_forward.1} parent=11 // pred_check
          %p315 = pneg %p128
        $region26: #{mlp_forward.1} parent=11 // pred_check_branch
          %317 = sbr.rel (%p315) target = $region28
        $region27: #{mlp_forward.1} parent=11 // pred_region
          _
        $region28: #{mlp_forward.1} parent=11 // pred_fallthru
          _
        // Predicated region
        $region29: #{mlp_forward.1} parent=11 // pred_check
          %p318 = pneg %p149
        $region30: #{mlp_forward.1} parent=11 // pred_check_branch
          %320 = sbr.rel (%p318) target = $region32
        $region31: #{mlp_forward.1} parent=11 // pred_region
          _
        $region32: #{mlp_forward.1} parent=11 // pred_fallthru
          _
        // Predicated region
        $region33: #{mlp_forward.1} parent=11 // pred_check
          %p321 = pneg %p170
        $region34: #{mlp_forward.1} parent=11 // pred_check_branch
          %323 = sbr.rel (%p321) target = $region36
        $region35: #{mlp_forward.1} parent=11 // pred_region
          _
        $region36: #{mlp_forward.1} parent=11 // pred_fallthru
          _
        // Predicated region
        $region37: #{mlp_forward.1} parent=11 // pred_check
          %p324 = pneg %p191
        $region38: #{mlp_forward.1} parent=11 // pred_check_branch
          %326 = sbr.rel (%p324) target = $region40
        $region39: #{mlp_forward.1} parent=11 // pred_region
          _
        $region40: #{mlp_forward.1} parent=11 // pred_fallthru
          _
        // Predicated region
        $region41: #{mlp_forward.1} parent=11 // pred_check
          %p327 = pneg %p212
        $region42: #{mlp_forward.1} parent=11 // pred_check_branch
          %329 = sbr.rel (%p327) target = $region44
        $region43: #{mlp_forward.1} parent=11 // pred_region
          _
        $region44: #{mlp_forward.1} parent=11 // pred_fallthru
          _
        // Predicated region
        $region45: #{mlp_forward.1} parent=11 // pred_check
          %p330 = pneg %p233
        $region46: #{mlp_forward.1} parent=11 // pred_check_branch
          %332 = sbr.rel (%p330) target = $region48
        $region47: #{mlp_forward.1} parent=11 // pred_region
          _
        $region48: #{mlp_forward.1} parent=11 // pred_fallthru
          _
        // Predicated region
        $region49: #{mlp_forward.1} parent=11 // pred_check
          %p333 = pneg %p254
        $region50: #{mlp_forward.1} parent=11 // pred_check_branch
          %335 = sbr.rel (%p333) target = $region52
        $region51: #{mlp_forward.1} parent=11 // pred_region
          _
        $region52: #{mlp_forward.1} parent=11 // pred_fallthru
          _
      $region12: #{mlp_forward.1} parent=5 // pred_fallthru
        _
      %p336 = scmp.lt.s32.totalorder %s18, 4
      // Predicated region
      $region53: #{mlp_forward.1} parent=5 // pred_check
        %p337 = pneg %p336
      $region54: #{mlp_forward.1} parent=5 // pred_check_branch
        %339 = sbr.rel (%p337) target = $region56
      $region55: #{mlp_forward.1} parent=5 // pred_region
        // Predicated region
        $region57: #{mlp_forward.1} parent=55 // pred_check
          %p340 = pneg %p38
        $region58: #{mlp_forward.1} parent=55 // pred_check_branch
          %342 = sbr.rel (%p340) target = $region60
        $region59: #{mlp_forward.1} parent=55 // pred_region
          %s343 = smul.u32 8, %s18
          %p344 = scmp.lt.s32.totalorder %s343, 31
          %s345 = scalar_select %p344, %s343, 31
          %s346 = smul.addr %s345, 4
          %s347 = scalar_lea.vmem %s0, %s346
          %s348 = smul.u32 8, %s18
        $region60: #{mlp_forward.1} parent=55 // pred_fallthru
          _
      $region56: #{mlp_forward.1} parent=5 // pred_fallthru
        _
      %p349 = scmp.le.s32.totalorder 1, %s18
      %p350 = scmp.lt.s32.totalorder %s18, 5
      %p351 = pnand %p349, %p350
      %p352 = pneg %p351
      // Predicated region
      $region61: #{mlp_forward.1} parent=5 // pred_check
        _
      $region62: #{mlp_forward.1} parent=5 // pred_check_branch
        %354 = sbr.rel (%p351) target = $region64
      $region63: #{mlp_forward.1} parent=5 // pred_region
        %s355 = ssub.s32 %s18, 1
        // Predicated region
        $region65: #{mlp_forward.1} parent=63 // pred_check
          %p356 = pneg %p65
        $region66: #{mlp_forward.1} parent=63 // pred_check_branch
          %358 = sbr.rel (%p356) target = $region68
        $region67: #{mlp_forward.1} parent=63 // pred_region
          %360 = dma.done [#allocation3], 256
        $region68: #{mlp_forward.1} parent=63 // pred_fallthru
          _
        %s361 = smul.u32 8, %s23
        %p362 = scmp.lt.s32.totalorder %s361, 31
        %s363 = scalar_select %p362, %s361, 31
        %s364 = smul.addr %s363, 4
        %s365 = scalar_lea.vmem %s0, %s364
        %p366 = pneg %p44
        %p367 = pneg %p41
        %p368 = pneg %p65
        %p369 = pneg %p62
        %p370 = pneg %p86
        %p371 = pneg %p83
        %p372 = pneg %p107
        %p373 = pneg %p104
        %p374 = pneg %p128
        %p375 = pneg %p125
        %p376 = pneg %p149
        %p377 = pneg %p146
        %p378 = pneg %p170
        %p379 = pneg %p167
        %p380 = pneg %p191
        %p381 = pneg %p188
        %p382 = pneg %p212
        %p383 = pneg %p209
        %p384 = pneg %p233
        %p385 = pneg %p230
        %p386 = pneg %p254
        %p387 = pneg %p251
        %p388 = pneg %p280
        %p389 = pneg %p277
        %s390 = smul.u32 8, %s23
        %p391 = scmp.lt.s32.totalorder %s390, 31
        %s392 = scalar_select %p391, %s390, 31
        %s393 = smul.addr %s392, 4
        %s394 = scalar_lea.vmem %s11, %s393
        %s395 = smul.u32 8, %s23
        %p396 = scmp.lt.s32.totalorder %s395, 31
        %s397 = scalar_select %p396, %s395, 31
        %s398 = smul.addr %s397, 4
        %s399 = scalar_lea.vmem %s0, %s398
        %s400 = smul.u32 8, %s23
        %s401 = smul.u32 8, %s23
        %p402 = scmp.lt.s32.totalorder %s401, 31
        %s403 = scalar_select %p402, %s401, 31
        %s404 = smul.addr %s403, 4
        %s405 = scalar_lea.vmem %s11, %s404
        %s406 = smul.u32 8, %s23
        %v408 = vld [vmem:[%s399] sm:$0xf]
        %v409 = vld [vmem:[%s399 + $0x4] sm:$0xf]
        %v410 = vld [vmem:[%s399 + $0x8] sm:$0xf]
        %v411 = vld [vmem:[%s399 + $0xc] sm:$0xf]
        %v412 = vld [vmem:[%s399 + $0x10] sm:$0xf]
        %v413 = vld [vmem:[%s399 + $0x14] sm:$0xf]
        %v414 = vld [vmem:[%s399 + $0x18] sm:$0xf]
        %v415 = vld [vmem:[%s399 + $0x1c] sm:$0xf]
        %v416 = vld [vmem:[#allocation2] sm:$0xf]
        %v417 = vld [vmem:[#allocation2 + $0x4] sm:$0xf]
        %v418 = vld [vmem:[#allocation2 + $0x8] sm:$0xf]
        %v419 = vld [vmem:[#allocation2 + $0xc] sm:$0xf]
        %v420 = vld [vmem:[%s2] sm:$0x1]
        %v422 = vperm.slane %v420, 0
        %v432 = vunpack.c.l.b16 %v408
        %v433 = vunpack.c.l.b16 %v409
        %v434 = vunpack.c.l.b16 %v410
        %v435 = vunpack.c.l.b16 %v411
        %v436 = vunpack.c.l.b16 %v412
        %v437 = vunpack.c.l.b16 %v413
        %v438 = vunpack.c.l.b16 %v414
        %v439 = vunpack.c.l.b16 %v415
        %v440 = vpack.c.b16 %v433, %v432
        %v441 = vpack.c.b16 %v435, %v434
        %v442 = vpack.c.b16 %v437, %v436
        %v443 = vpack.c.b16 %v439, %v438
        %v448 = vunpack.c.l.b16 %v416
        %v449 = vunpack.c.l.b16 %v417
        %v450 = vunpack.c.l.b16 %v418
        %v451 = vunpack.c.l.b16 %v419
        %v452 = vpack.c.b16 %v449, %v448
        %v453 = vpack.c.b16 %v451, %v450
        %vm456 = vcmask 261120
        %v458 = vsel %vm456, %v440, 0
        %v461 = vsel %vm456, %v441, 0
        %v464 = vsel %vm456, %v442, 0
        %v467 = vsel %vm456, %v443, 0
        %469 = vmatpush.bf16.msra.mxu0 0
        %470 = vmatpush.bf16.msra.mxu0 0
        %471 = vmatpush.bf16.msra.mxu0 0
        %472 = vmatpush.bf16.msra.mxu0 0
        %473 = vmatpush.bf16.msra.mxu0 0
        %474 = vmatpush.bf16.msra.mxu0 0
        %475 = vmatpush.bf16.msra.mxu0 %v453
        %476 = vmatpush.bf16.msra.mxu0 %v452
        %477 = vmatmul.bf16.gmra.mxu0 %v458
        %v478 = vpop.f32.mrf.mxu0
        %v479 = vadd.f32 %v422, %v478
        %v480 = vpop.f32.mrf.mxu0
        %v481 = vadd.f32 %v422, %v480
        %482 = vmatmul.bf16.gmra.mxu0 %v461
        %v483 = vpop.f32.mrf.mxu0
        %v484 = vadd.f32 %v422, %v483
        %v485 = vpop.f32.mrf.mxu0
        %v486 = vadd.f32 %v422, %v485
        %487 = vmatmul.bf16.gmra.mxu0 %v464
        %v488 = vpop.f32.mrf.mxu0
        %v489 = vadd.f32 %v422, %v488
        %v490 = vpop.f32.mrf.mxu0
        %v491 = vadd.f32 %v422, %v490
        %492 = vmatmul.bf16.gmra.mxu0 %v467
        %v493 = vpop.f32.mrf.mxu0
        %v494 = vadd.f32 %v422, %v493
        %v495 = vpop.f32.mrf.mxu0
        %v496 = vadd.f32 %v422, %v495
        %497 = vdwg.mxu0
        %v498 = vpack.c.bf16 %v479, %v479
        %v499 = vpack.c.bf16 %v481, %v481
        %v500 = vpack.c.bf16 %v484, %v484
        %v501 = vpack.c.bf16 %v486, %v486
        %v502 = vpack.c.bf16 %v489, %v489
        %v503 = vpack.c.bf16 %v491, %v491
        %v504 = vpack.c.bf16 %v494, %v494
        %v505 = vpack.c.bf16 %v496, %v496
        %v506 = vunpack.c.l.bf16 %v498
        %v507 = vunpack.c.l.bf16 %v499
        %v508 = vunpack.c.l.bf16 %v500
        %v509 = vunpack.c.l.bf16 %v501
        %v510 = vunpack.c.l.bf16 %v502
        %v511 = vunpack.c.l.bf16 %v503
        %v512 = vunpack.c.l.bf16 %v504
        %v513 = vunpack.c.l.bf16 %v505
        %v514 = vmax.f32 %v506, 0.0
        %v515 = vmax.f32 %v507, 0.0
        %v516 = vmax.f32 %v508, 0.0
        %v517 = vmax.f32 %v509, 0.0
        %v518 = vmax.f32 %v510, 0.0
        %v519 = vmax.f32 %v511, 0.0
        %v520 = vmax.f32 %v512, 0.0
        %v521 = vmax.f32 %v513, 0.0
        %v522 = vpack.c.bf16 %v515, %v514
        %v523 = vpack.c.bf16 %v517, %v516
        %v524 = vpack.c.bf16 %v519, %v518
        %v525 = vpack.c.bf16 %v521, %v520
        %v526 = vld [vmem:[%s3] sm:$0xf]
        %v527 = vld [vmem:[%s3 + $0x4] sm:$0xf]
        %v528 = vld [vmem:[%s3 + $0x8] sm:$0xf]
        %v529 = vld [vmem:[%s3 + $0xc] sm:$0xf]
        %v530 = vld [vmem:[%s3 + $0x10] sm:$0xf]
        %v531 = vld [vmem:[%s3 + $0x14] sm:$0xf]
        %v532 = vld [vmem:[%s3 + $0x18] sm:$0xf]
        %v533 = vld [vmem:[%s3 + $0x1c] sm:$0xf]
        %v534 = vld [vmem:[%s3 + $0x20] sm:$0xf]
        %v535 = vld [vmem:[%s3 + $0x24] sm:$0xf]
        %v536 = vld [vmem:[%s3 + $0x28] sm:$0xf]
        %v537 = vld [vmem:[%s3 + $0x2c] sm:$0xf]
        %v538 = vld [vmem:[%s3 + $0x30] sm:$0xf]
        %v539 = vld [vmem:[%s3 + $0x34] sm:$0xf]
        %v540 = vld [vmem:[%s3 + $0x38] sm:$0xf]
        %v541 = vld [vmem:[%s3 + $0x3c] sm:$0xf]
        %v542 = vld [vmem:[%s4] sm:$0x1]
        %v544 = vperm.slane %v542, 0
        %v562 = vunpack.c.l.b16 %v526
        %v563 = vunpack.c.l.b16 %v527
        %v564 = vunpack.c.l.b16 %v528
        %v565 = vunpack.c.l.b16 %v529
        %v566 = vunpack.c.l.b16 %v530
        %v567 = vunpack.c.l.b16 %v531
        %v568 = vunpack.c.l.b16 %v532
        %v569 = vunpack.c.l.b16 %v533
        %v570 = vunpack.c.l.b16 %v534
        %v571 = vunpack.c.l.b16 %v535
        %v572 = vunpack.c.l.b16 %v536
        %v573 = vunpack.c.l.b16 %v537
        %v574 = vunpack.c.l.b16 %v538
        %v575 = vunpack.c.l.b16 %v539
        %v576 = vunpack.c.l.b16 %v540
        %v577 = vunpack.c.l.b16 %v541
        %v578 = vpack.c.b16 %v563, %v562
        %v579 = vpack.c.b16 %v565, %v564
        %v580 = vpack.c.b16 %v567, %v566
        %v581 = vpack.c.b16 %v569, %v568
        %v582 = vpack.c.b16 %v571, %v570
        %v583 = vpack.c.b16 %v573, %v572
        %v584 = vpack.c.b16 %v575, %v574
        %v585 = vpack.c.b16 %v577, %v576
        %594 = vmatpush.bf16.msra.mxu0 %v585
        %595 = vmatpush.bf16.msra.mxu0 %v584
        %596 = vmatpush.bf16.msra.mxu0 %v583
        %597 = vmatpush.bf16.msra.mxu0 %v582
        %598 = vmatpush.bf16.msra.mxu0 %v581
        %599 = vmatpush.bf16.msra.mxu0 %v580
        %600 = vmatpush.bf16.msra.mxu0 %v579
        %601 = vmatpush.bf16.msra.mxu0 %v578
        %602 = vmatmul.bf16.gmra.mxu0 %v522
        %v603 = vpop.f32.mrf.mxu0
        %v604 = vadd.f32 %v544, %v603
        %v605 = vpop.f32.mrf.mxu0
        %v606 = vadd.f32 %v544, %v605
        %607 = vmatmul.bf16.gmra.mxu0 %v523
        %v608 = vpop.f32.mrf.mxu0
        %v609 = vadd.f32 %v544, %v608
        %v610 = vpop.f32.mrf.mxu0
        %v611 = vadd.f32 %v544, %v610
        %612 = vmatmul.bf16.gmra.mxu0 %v524
        %v613 = vpop.f32.mrf.mxu0
        %v614 = vadd.f32 %v544, %v613
        %v615 = vpop.f32.mrf.mxu0
        %v616 = vadd.f32 %v544, %v615
        %617 = vmatmul.bf16.gmra.mxu0 %v525
        %v618 = vpop.f32.mrf.mxu0
        %v619 = vadd.f32 %v544, %v618
        %v620 = vpop.f32.mrf.mxu0
        %v621 = vadd.f32 %v544, %v620
        %622 = vdwg.mxu0
        %v623 = vpack.c.bf16 %v604, %v604
        %v624 = vpack.c.bf16 %v606, %v606
        %v625 = vpack.c.bf16 %v609, %v609
        %v626 = vpack.c.bf16 %v611, %v611
        %v627 = vpack.c.bf16 %v614, %v614
        %v628 = vpack.c.bf16 %v616, %v616
        %v629 = vpack.c.bf16 %v619, %v619
        %v630 = vpack.c.bf16 %v621, %v621
        %v631 = vunpack.c.l.bf16 %v623
        %v632 = vunpack.c.l.bf16 %v624
        %v633 = vunpack.c.l.bf16 %v625
        %v634 = vunpack.c.l.bf16 %v626
        %v635 = vunpack.c.l.bf16 %v627
        %v636 = vunpack.c.l.bf16 %v628
        %v637 = vunpack.c.l.bf16 %v629
        %v638 = vunpack.c.l.bf16 %v630
        %v639 = vmax.f32 %v631, 0.0
        %v640 = vmax.f32 %v632, 0.0
        %v641 = vmax.f32 %v633, 0.0
        %v642 = vmax.f32 %v634, 0.0
        %v643 = vmax.f32 %v635, 0.0
        %v644 = vmax.f32 %v636, 0.0
        %v645 = vmax.f32 %v637, 0.0
        %v646 = vmax.f32 %v638, 0.0
        %v647 = vpack.c.bf16 %v640, %v639
        %v648 = vpack.c.bf16 %v642, %v641
        %v649 = vpack.c.bf16 %v644, %v643
        %v650 = vpack.c.bf16 %v646, %v645
        %v651 = vld [vmem:[%s5] sm:$0xf]
        %v652 = vld [vmem:[%s5 + $0x4] sm:$0xf]
        %v653 = vld [vmem:[%s5 + $0x8] sm:$0xf]
        %v654 = vld [vmem:[%s5 + $0xc] sm:$0xf]
        %v655 = vld [vmem:[%s5 + $0x10] sm:$0xf]
        %v656 = vld [vmem:[%s5 + $0x14] sm:$0xf]
        %v657 = vld [vmem:[%s5 + $0x18] sm:$0xf]
        %v658 = vld [vmem:[%s5 + $0x1c] sm:$0xf]
        %v659 = vld [vmem:[%s5 + $0x20] sm:$0xf]
        %v660 = vld [vmem:[%s5 + $0x24] sm:$0xf]
        %v661 = vld [vmem:[%s5 + $0x28] sm:$0xf]
        %v662 = vld [vmem:[%s5 + $0x2c] sm:$0xf]
        %v663 = vld [vmem:[%s5 + $0x30] sm:$0xf]
        %v664 = vld [vmem:[%s5 + $0x34] sm:$0xf]
        %v665 = vld [vmem:[%s5 + $0x38] sm:$0xf]
        %v666 = vld [vmem:[%s5 + $0x3c] sm:$0xf]
        %v667 = vld [vmem:[%s6] sm:$0x1]
        %v669 = vperm.slane %v667, 0
        %v687 = vunpack.c.l.b16 %v651
        %v688 = vunpack.c.l.b16 %v652
        %v689 = vunpack.c.l.b16 %v653
        %v690 = vunpack.c.l.b16 %v654
        %v691 = vunpack.c.l.b16 %v655
        %v692 = vunpack.c.l.b16 %v656
        %v693 = vunpack.c.l.b16 %v657
        %v694 = vunpack.c.l.b16 %v658
        %v695 = vunpack.c.l.b16 %v659
        %v696 = vunpack.c.l.b16 %v660
        %v697 = vunpack.c.l.b16 %v661
        %v698 = vunpack.c.l.b16 %v662
        %v699 = vunpack.c.l.b16 %v663
        %v700 = vunpack.c.l.b16 %v664
        %v701 = vunpack.c.l.b16 %v665
        %v702 = vunpack.c.l.b16 %v666
        %v703 = vpack.c.b16 %v688, %v687
        %v704 = vpack.c.b16 %v690, %v689
        %v705 = vpack.c.b16 %v692, %v691
        %v706 = vpack.c.b16 %v694, %v693
        %v707 = vpack.c.b16 %v696, %v695
        %v708 = vpack.c.b16 %v698, %v697
        %v709 = vpack.c.b16 %v700, %v699
        %v710 = vpack.c.b16 %v702, %v701
        %719 = vmatpush.bf16.msra.mxu0 %v710
        %720 = vmatpush.bf16.msra.mxu0 %v709
        %721 = vmatpush.bf16.msra.mxu0 %v708
        %722 = vmatpush.bf16.msra.mxu0 %v707
        %723 = vmatpush.bf16.msra.mxu0 %v706
        %724 = vmatpush.bf16.msra.mxu0 %v705
        %725 = vmatpush.bf16.msra.mxu0 %v704
        %726 = vmatpush.bf16.msra.mxu0 %v703
        %727 = vmatmul.bf16.gmra.mxu0 %v647
        %v728 = vpop.f32.mrf.mxu0
        %v729 = vadd.f32 %v669, %v728
        %v730 = vpop.f32.mrf.mxu0
        %v731 = vadd.f32 %v669, %v730
        %732 = vmatmul.bf16.gmra.mxu0 %v648
        %v733 = vpop.f32.mrf.mxu0
        %v734 = vadd.f32 %v669, %v733
        %v735 = vpop.f32.mrf.mxu0
        %v736 = vadd.f32 %v669, %v735
        %737 = vmatmul.bf16.gmra.mxu0 %v649
        %v738 = vpop.f32.mrf.mxu0
        %v739 = vadd.f32 %v669, %v738
        %v740 = vpop.f32.mrf.mxu0
        %v741 = vadd.f32 %v669, %v740
        %742 = vmatmul.bf16.gmra.mxu0 %v650
        %v743 = vpop.f32.mrf.mxu0
        %v744 = vadd.f32 %v669, %v743
        %v745 = vpop.f32.mrf.mxu0
        %v746 = vadd.f32 %v669, %v745
        %747 = vdwg.mxu0
        %v748 = vpack.c.bf16 %v729, %v729
        %v749 = vpack.c.bf16 %v731, %v731
        %v750 = vpack.c.bf16 %v734, %v734
        %v751 = vpack.c.bf16 %v736, %v736
        %v752 = vpack.c.bf16 %v739, %v739
        %v753 = vpack.c.bf16 %v741, %v741
        %v754 = vpack.c.bf16 %v744, %v744
        %v755 = vpack.c.bf16 %v746, %v746
        %v756 = vunpack.c.l.bf16 %v748
        %v757 = vunpack.c.l.bf16 %v749
        %v758 = vunpack.c.l.bf16 %v750
        %v759 = vunpack.c.l.bf16 %v751
        %v760 = vunpack.c.l.bf16 %v752
        %v761 = vunpack.c.l.bf16 %v753
        %v762 = vunpack.c.l.bf16 %v754
        %v763 = vunpack.c.l.bf16 %v755
        %v764 = vmax.f32 %v756, 0.0
        %v765 = vmax.f32 %v757, 0.0
        %v766 = vmax.f32 %v758, 0.0
        %v767 = vmax.f32 %v759, 0.0
        %v768 = vmax.f32 %v760, 0.0
        %v769 = vmax.f32 %v761, 0.0
        %v770 = vmax.f32 %v762, 0.0
        %v771 = vmax.f32 %v763, 0.0
        %v772 = vpack.c.bf16 %v765, %v764
        %v773 = vpack.c.bf16 %v767, %v766
        %v774 = vpack.c.bf16 %v769, %v768
        %v775 = vpack.c.bf16 %v771, %v770
        %v776 = vld [vmem:[%s7] sm:$0xf]
        %v777 = vld [vmem:[%s7 + $0x4] sm:$0xf]
        %v778 = vld [vmem:[%s7 + $0x8] sm:$0xf]
        %v779 = vld [vmem:[%s7 + $0xc] sm:$0xf]
        %v780 = vld [vmem:[%s7 + $0x10] sm:$0xf]
        %v781 = vld [vmem:[%s7 + $0x14] sm:$0xf]
        %v782 = vld [vmem:[%s7 + $0x18] sm:$0xf]
        %v783 = vld [vmem:[%s7 + $0x1c] sm:$0xf]
        %v784 = vld [vmem:[%s7 + $0x20] sm:$0xf]
        %v785 = vld [vmem:[%s7 + $0x24] sm:$0xf]
        %v786 = vld [vmem:[%s7 + $0x28] sm:$0xf]
        %v787 = vld [vmem:[%s7 + $0x2c] sm:$0xf]
        %v788 = vld [vmem:[%s7 + $0x30] sm:$0xf]
        %v789 = vld [vmem:[%s7 + $0x34] sm:$0xf]
        %v790 = vld [vmem:[%s7 + $0x38] sm:$0xf]
        %v791 = vld [vmem:[%s7 + $0x3c] sm:$0xf]
        %v792 = vld [vmem:[%s8] sm:$0x1]
        %v794 = vperm.slane %v792, 0
        %v812 = vunpack.c.l.b16 %v776
        %v813 = vunpack.c.l.b16 %v777
        %v814 = vunpack.c.l.b16 %v778
        %v815 = vunpack.c.l.b16 %v779
        %v816 = vunpack.c.l.b16 %v780
        %v817 = vunpack.c.l.b16 %v781
        %v818 = vunpack.c.l.b16 %v782
        %v819 = vunpack.c.l.b16 %v783
        %v820 = vunpack.c.l.b16 %v784
        %v821 = vunpack.c.l.b16 %v785
        %v822 = vunpack.c.l.b16 %v786
        %v823 = vunpack.c.l.b16 %v787
        %v824 = vunpack.c.l.b16 %v788
        %v825 = vunpack.c.l.b16 %v789
        %v826 = vunpack.c.l.b16 %v790
        %v827 = vunpack.c.l.b16 %v791
        %v828 = vpack.c.b16 %v813, %v812
        %v829 = vpack.c.b16 %v815, %v814
        %v830 = vpack.c.b16 %v817, %v816
        %v831 = vpack.c.b16 %v819, %v818
        %v832 = vpack.c.b16 %v821, %v820
        %v833 = vpack.c.b16 %v823, %v822
        %v834 = vpack.c.b16 %v825, %v824
        %v835 = vpack.c.b16 %v827, %v826
        %844 = vmatpush.bf16.msra.mxu0 %v835
        %845 = vmatpush.bf16.msra.mxu0 %v834
        %846 = vmatpush.bf16.msra.mxu0 %v833
        %847 = vmatpush.bf16.msra.mxu0 %v832
        %848 = vmatpush.bf16.msra.mxu0 %v831
        %849 = vmatpush.bf16.msra.mxu0 %v830
        %850 = vmatpush.bf16.msra.mxu0 %v829
        %851 = vmatpush.bf16.msra.mxu0 %v828
        %852 = vmatmul.bf16.gmra.mxu0 %v772
        %v853 = vpop.f32.mrf.mxu0
        %v854 = vadd.f32 %v794, %v853
        %v855 = vpop.f32.mrf.mxu0
        %v856 = vadd.f32 %v794, %v855
        %857 = vmatmul.bf16.gmra.mxu0 %v773
        %v858 = vpop.f32.mrf.mxu0
        %v859 = vadd.f32 %v794, %v858
        %v860 = vpop.f32.mrf.mxu0
        %v861 = vadd.f32 %v794, %v860
        %862 = vmatmul.bf16.gmra.mxu0 %v774
        %v863 = vpop.f32.mrf.mxu0
        %v864 = vadd.f32 %v794, %v863
        %v865 = vpop.f32.mrf.mxu0
        %v866 = vadd.f32 %v794, %v865
        %867 = vmatmul.bf16.gmra.mxu0 %v775
        %v868 = vpop.f32.mrf.mxu0
        %v869 = vadd.f32 %v794, %v868
        %v870 = vpop.f32.mrf.mxu0
        %v871 = vadd.f32 %v794, %v870
        %872 = vdwg.mxu0
        %v873 = vpack.c.bf16 %v854, %v854
        %v874 = vpack.c.bf16 %v856, %v856
        %v875 = vpack.c.bf16 %v859, %v859
        %v876 = vpack.c.bf16 %v861, %v861
        %v877 = vpack.c.bf16 %v864, %v864
        %v878 = vpack.c.bf16 %v866, %v866
        %v879 = vpack.c.bf16 %v869, %v869
        %v880 = vpack.c.bf16 %v871, %v871
        %v881 = vunpack.c.l.bf16 %v873
        %v882 = vunpack.c.l.bf16 %v874
        %v883 = vunpack.c.l.bf16 %v875
        %v884 = vunpack.c.l.bf16 %v876
        %v885 = vunpack.c.l.bf16 %v877
        %v886 = vunpack.c.l.bf16 %v878
        %v887 = vunpack.c.l.bf16 %v879
        %v888 = vunpack.c.l.bf16 %v880
        %v889 = vmax.f32 %v881, 0.0
        %v890 = vmax.f32 %v882, 0.0
        %v891 = vmax.f32 %v883, 0.0
        %v892 = vmax.f32 %v884, 0.0
        %v893 = vmax.f32 %v885, 0.0
        %v894 = vmax.f32 %v886, 0.0
        %v895 = vmax.f32 %v887, 0.0
        %v896 = vmax.f32 %v888, 0.0
        %v897 = vpack.c.bf16 %v890, %v889
        %v898 = vpack.c.bf16 %v892, %v891
        %v899 = vpack.c.bf16 %v894, %v893
        %v900 = vpack.c.bf16 %v896, %v895
        %v901 = vld [vmem:[%s9] sm:$0xf]
        %v902 = vld [vmem:[%s9 + $0x4] sm:$0xf]
        %v903 = vld [vmem:[%s9 + $0x8] sm:$0xf]
        %v904 = vld [vmem:[%s9 + $0xc] sm:$0xf]
        %v905 = vld [vmem:[%s9 + $0x10] sm:$0xf]
        %v906 = vld [vmem:[%s9 + $0x14] sm:$0xf]
        %v907 = vld [vmem:[%s9 + $0x18] sm:$0xf]
        %v908 = vld [vmem:[%s9 + $0x1c] sm:$0xf]
        %v909 = vld [vmem:[%s9 + $0x20] sm:$0xf]
        %v910 = vld [vmem:[%s9 + $0x24] sm:$0xf]
        %v911 = vld [vmem:[%s9 + $0x28] sm:$0xf]
        %v912 = vld [vmem:[%s9 + $0x2c] sm:$0xf]
        %v913 = vld [vmem:[%s9 + $0x30] sm:$0xf]
        %v914 = vld [vmem:[%s9 + $0x34] sm:$0xf]
        %v915 = vld [vmem:[%s9 + $0x38] sm:$0xf]
        %v916 = vld [vmem:[%s9 + $0x3c] sm:$0xf]
        %v917 = vld [vmem:[%s10] sm:$0x1]
        %v919 = vperm.slane %v917, 0
        %v937 = vunpack.c.l.b16 %v901
        %v938 = vunpack.c.l.b16 %v902
        %v939 = vunpack.c.l.b16 %v903
        %v940 = vunpack.c.l.b16 %v904
        %v941 = vunpack.c.l.b16 %v905
        %v942 = vunpack.c.l.b16 %v906
        %v943 = vunpack.c.l.b16 %v907
        %v944 = vunpack.c.l.b16 %v908
        %v945 = vunpack.c.l.b16 %v909
        %v946 = vunpack.c.l.b16 %v910
        %v947 = vunpack.c.l.b16 %v911
        %v948 = vunpack.c.l.b16 %v912
        %v949 = vunpack.c.l.b16 %v913
        %v950 = vunpack.c.l.b16 %v914
        %v951 = vunpack.c.l.b16 %v915
        %v952 = vunpack.c.l.b16 %v916
        %v953 = vpack.c.b16 %v938, %v937
        %v954 = vpack.c.b16 %v940, %v939
        %v955 = vpack.c.b16 %v942, %v941
        %v956 = vpack.c.b16 %v944, %v943
        %v957 = vpack.c.b16 %v946, %v945
        %v958 = vpack.c.b16 %v948, %v947
        %v959 = vpack.c.b16 %v950, %v949
        %v960 = vpack.c.b16 %v952, %v951
        %969 = vmatpush.bf16.msra.mxu0 %v960
        %970 = vmatpush.bf16.msra.mxu0 %v959
        %971 = vmatpush.bf16.msra.mxu0 %v958
        %972 = vmatpush.bf16.msra.mxu0 %v957
        %973 = vmatpush.bf16.msra.mxu0 %v956
        %974 = vmatpush.bf16.msra.mxu0 %v955
        %975 = vmatpush.bf16.msra.mxu0 %v954
        %976 = vmatpush.bf16.msra.mxu0 %v953
        %977 = vmatmul.bf16.gmra.mxu0 %v897
        %v978 = vpop.f32.mrf.mxu0
        %v979 = vadd.f32 %v919, %v978
        %v980 = vpop.f32.mrf.mxu0
        %v981 = vadd.f32 %v919, %v980
        %982 = vmatmul.bf16.gmra.mxu0 %v898
        %v983 = vpop.f32.mrf.mxu0
        %v984 = vadd.f32 %v919, %v983
        %v985 = vpop.f32.mrf.mxu0
        %v986 = vadd.f32 %v919, %v985
        %987 = vmatmul.bf16.gmra.mxu0 %v899
        %v988 = vpop.f32.mrf.mxu0
        %v989 = vadd.f32 %v919, %v988
        %v990 = vpop.f32.mrf.mxu0
        %v991 = vadd.f32 %v919, %v990
        %992 = vmatmul.bf16.gmra.mxu0 %v900
        %v993 = vpop.f32.mrf.mxu0
        %v994 = vadd.f32 %v919, %v993
        %v995 = vpop.f32.mrf.mxu0
        %v996 = vadd.f32 %v919, %v995
        %997 = vdwg.mxu0
        %v998 = vpack.c.bf16 %v979, %v979
        %v999 = vpack.c.bf16 %v981, %v981
        %v1000 = vpack.c.bf16 %v984, %v984
        %v1001 = vpack.c.bf16 %v986, %v986
        %v1002 = vpack.c.bf16 %v989, %v989
        %v1003 = vpack.c.bf16 %v991, %v991
        %v1004 = vpack.c.bf16 %v994, %v994
        %v1005 = vpack.c.bf16 %v996, %v996
        %1006 = vst [vmem:[%s405] sm:$0xf] %v998
        %1007 = vst [vmem:[%s405 + $0x4] sm:$0xf] %v999
        %1008 = vst [vmem:[%s405 + $0x8] sm:$0xf] %v1000
        %1009 = vst [vmem:[%s405 + $0xc] sm:$0xf] %v1001
        %1010 = vst [vmem:[%s405 + $0x10] sm:$0xf] %v1002
        %1011 = vst [vmem:[%s405 + $0x14] sm:$0xf] %v1003
        %1012 = vst [vmem:[%s405 + $0x18] sm:$0xf] %v1004
        %1013 = vst [vmem:[%s405 + $0x1c] sm:$0xf] %v1005
        %s1014 = smul.u32 8, %s23
        %p1015 = scmp.lt.s32.totalorder %s1014, 31
        %s1016 = scalar_select %p1015, %s1014, 31
        %s1017 = smul.addr %s1016, 4
        %s1018 = scalar_lea.vmem %s11, %s1017
        // Predicated region
        $region69: #{mlp_forward.1} parent=63 // pred_check
          %p1019 = pneg %p277
        $region70: #{mlp_forward.1} parent=63 // pred_check_branch
          %1021 = sbr.rel (%p1019) target = $region72
        $region71: #{mlp_forward.1} parent=63 // pred_region
          %s1022 = smul.u32 8, %s23
        $region72: #{mlp_forward.1} parent=63 // pred_fallthru
          _
      $region64: #{mlp_forward.1} parent=5 // pred_fallthru
        _
      %p1023 = scmp.le.s32.totalorder 2, %s18
      // Predicated region
      $region73: #{mlp_forward.1} parent=5 // pred_check
        %p1024 = pneg %p1023
      $region74: #{mlp_forward.1} parent=5 // pred_check_branch
        %1026 = sbr.rel (%p1024) target = $region76
      $region75: #{mlp_forward.1} parent=5 // pred_region
        %s1027 = ssub.s32 %s18, 2
        // Predicated region
        $region77: #{mlp_forward.1} parent=75 // pred_check
          %p1028 = pneg %p283
        $region78: #{mlp_forward.1} parent=75 // pred_check_branch
          %1030 = sbr.rel (%p1028) target = $region80
        $region79: #{mlp_forward.1} parent=75 // pred_region
          %s1031 = smul.u32 8, %s24
          %p1032 = scmp.lt.s32.totalorder %s1031, 31
          %s1033 = scalar_select %p1032, %s1031, 31
          %s1034 = smul.addr %s1033, 4
          %s1035 = scalar_lea.vmem %s11, %s1034
        $region80: #{mlp_forward.1} parent=75 // pred_fallthru
          _
      $region76: #{mlp_forward.1} parent=5 // pred_fallthru
        _
    $region6: #{mlp_forward.1} parent=1 // loop_footer
      %s22 = sadd.s32 1, %s18
    $region7: #{mlp_forward.1} parent=1 // loop_footer_branch
      %17 = sbr.rel target = $region3
    $region8: #{mlp_forward.1} parent=1 // loop_exit
      _
    %1036 = vsyncpa [#allocation3], 1
    %s1037 = scalar_lea.sflag [#allocation3], 1
    %1038 = vsyncpa %s1037, 1

</llo_original>
